<compile_context>
chip_gen: v7x
topology: tpu7x:2x2x1
jax: 0.10.0
libtpu: 0.0.40
codegen_flags: <defaults>
</compile_context>

<pallas_src>
import math

import jax
import jax.numpy as jnp
from jax.experimental import pallas as pl
from jax.experimental.pallas import tpu as pltpu

TEMPERATURE = 10.0
INIT_STD = 0.01  # deterministic synthetic init (module references a global init_std)


# --------------------------------------------------------------------------- #
# Kernels
# --------------------------------------------------------------------------- #
def _quant_kernel(x_ref, thr_ref, scale_ref, out_ref):
    # x_ref:     (TILE_B, D) embeddings tile
    # thr_ref:   (1, D)  = TEMPERATURE * thresholds   (resident across grid steps)
    # scale_ref: (1, D)  = TEMPERATURE * |scales|     (resident across grid steps)
    x = x_ref[...].astype(jnp.float32)
    v = x * scale_ref[...] - thr_ref[...]            # (1, D) broadcasts over batch
    out_ref[...] = jax.nn.sigmoid(v).astype(out_ref.dtype)


def _binary_kernel(x_ref, thr_ref, scale_ref, out_ref):
    x = x_ref[...].astype(jnp.float32)
    v = x * scale_ref[...] - thr_ref[...]
    # sigmoid(v) > 0.5  <=>  v > 0 (exact, incl. v == 0; T > 0 preserves sign),
    # so skip the EUP exp/recip chain entirely on the binary path.
    out_ref[...] = (v > 0).astype(out_ref.dtype)


# --------------------------------------------------------------------------- #
# Tiling helpers
# --------------------------------------------------------------------------- #
_MIN_GRID_STEPS = 4           # >= 2 * num TensorCores (v7x) so "parallel" can split
_SMALL_INPUT_BYTES = 1 << 20  # below this, launch overhead dominates anyway


def _target_tile_bytes():
    """Per-tile byte target, generation-gated by physical VMEM size."""
    try:
        vmem = pltpu.get_tpu_info().vmem_capacity_bytes
    except Exception:  # conservative fallback if the query is unavailable
        vmem = None
    if vmem is not None and vmem <= (64 << 20):
        # v7x: 64 MiB physical VMEM, ~3.2 TB/s HBM per TC -> larger tiles amortize
        # the per-grid-step overhead.  4 buffers * 4 MiB = 16 MiB << 32 MiB scoped.
        return 4 << 20
    # v5e (16 MiB scoped default) / v6e: ~2 MiB tiles already sit at ~85% roofline.
    return 2 << 20


def _sublane_granularity(*dtypes):
    """Sublane multiple for the narrowest dtype in flight (8 f32 / 16 bf16 / 32 i8)."""
    min_bytes = min(jnp.dtype(d).itemsize for d in dtypes)
    return max(8, 32 // max(1, min_bytes))


def _choose_tile_b(B, D, itemsize, gran):
    """Batch-tile size: bandwidth-friendly, multi-step, divisor-of-B preferred."""
    row_bytes = max(1, D * itemsize)
    total_bytes = B * row_bytes

    # Tiny inputs: one full-extent block (always layout-legal); a deeper grid
    # only adds per-step overhead there.
    if total_bytes <= _SMALL_INPUT_BYTES:
        return B

    min_steps = min(_MIN_GRID_STEPS, max(1, B // gran))
    tile = _target_tile_bytes() // row_bytes
    # Never collapse to a single/shallow grid: cap at ~B/min_steps so there are
    # always enough steps for DMA/compute overlap and the v7x core split.
    tile = min(tile, max(gran, B // min_steps))
    tile = max(gran, (tile // gran) * gran)

    # Prefer a tile that divides B so the last grid step is not a ragged,
    # mostly-masked block.
    for cand in range(tile, gran - 1, -gran):
        if B % cand == 0:
            return cand
    return min(tile, B)


def _lane_fold_factor(B, D):
    """Smallest k with (k*D) % 128 == 0 and B % k == 0 (1 if no fold applies)."""
    if D % 128 == 0:
        return 1
    k = 128 // math.gcd(D, 128)
    if k > 1 and B % k == 0:
        return k
    return 1


# --------------------------------------------------------------------------- #
# Wrapper
# --------------------------------------------------------------------------- #
def quantization_stage1_with_scales(embeddings, thresholds, scales,
                                    binary=False, binary_out_dtype=None):
    """Forward of QuantizationModuleStage1WithScales.

    embeddings: (B, D).  Passing bf16 halves HBM traffic (the headline win for
    this bandwidth-bound op); math is f32 inside the kernel on every generation.
    thresholds, scales: (D,).
    Returns (B, D) in embeddings.dtype.  For binary=True, `binary_out_dtype`
    (e.g. jnp.int8 / jnp.bool_) optionally narrows the writeback dtype
    (deviates from PyTorch's `.float()` return, hence opt-in).
    """
    B, D = embeddings.shape

    # Fold TEMPERATURE and |.| into the tiny (D,) params here: free on 1xD rows
    # (pre-scaling the big input instead would be the anti-pattern).
    thr_row = (TEMPERATURE * thresholds.astype(jnp.float32)).reshape(1, D)
    scl_row = (TEMPERATURE * jnp.abs(scales.astype(jnp.float32))).reshape(1, D)

    # Lane-density guard: keep the output lane axis a multiple of 128 so stores
    # are unmasked (vst, not vst.msk).
    k = _lane_fold_factor(B, D)
    x = embeddings
    if k > 1:
        x = embeddings.reshape(B // k, k * D)
        thr_row = jnp.tile(thr_row, (1, k))
        scl_row = jnp.tile(scl_row, (1, k))
    Bk, Dk = x.shape

    out_dtype = embeddings.dtype
    if binary and binary_out_dtype is not None:
        out_dtype = jnp.dtype(binary_out_dtype)   # narrower writeback = fewer HBM bytes

    kernel = _binary_kernel if binary else _quant_kernel

    gran = _sublane_granularity(x.dtype, out_dtype)
    tile_b = _choose_tile_b(Bk, Dk, x.dtype.itemsize, gran)
    grid = (pl.cdiv(Bk, tile_b),)

    out = pl.pallas_call(
        kernel,
        out_shape=jax.ShapeDtypeStruct((Bk, Dk), out_dtype),
        grid_spec=pltpu.PrefetchScalarGridSpec(
            num_scalar_prefetch=0,
            grid=grid,
            in_specs=[
                pl.BlockSpec((tile_b, Dk), lambda i: (i, 0)),   # embeddings tile
                pl.BlockSpec((1, Dk), lambda i: (0, 0)),        # T*thresholds (resident)
                pl.BlockSpec((1, Dk), lambda i: (0, 0)),        # T*|scales|   (resident)
            ],
            out_specs=pl.BlockSpec((tile_b, Dk), lambda i: (i, 0)),
        ),
        compiler_params=pltpu.CompilerParams(
            # Batch tiles are independent -> parallel (megacore sharding on v7x).
            dimension_semantics=("parallel",),
        ),
    )(x, thr_row, scl_row)

    if k > 1:
        out = out.reshape(B, D)
    return out


# --------------------------------------------------------------------------- #
# Self-test
# --------------------------------------------------------------------------- #
if __name__ == "__main__":
    key = jax.random.PRNGKey(0)
    k_x, k_thr, k_scl, k_big, k_bf, k_odd = jax.random.split(key, 6)

    embedding_dim = 128

    # Deterministic parameter init mirroring the module's __init__:
    #   thresholds = zeros(D) + randn(D) * init_std
    #   scales     = ones(D)  + randn(D) * init_std
    thresholds = jnp.zeros((embedding_dim,), jnp.float32) + \
        jax.random.normal(k_thr, (embedding_dim,), jnp.float32) * INIT_STD
    scales = jnp.ones((embedding_dim,), jnp.float32) + \
        jax.random.normal(k_scl, (embedding_dim,), jnp.float32) * INIT_STD

    def reference(x, thr, scl, binary=False):
        v = x.astype(jnp.float32) * jnp.abs(scl) - thr
        q = jax.nn.sigmoid(TEMPERATURE * v)
        return (q > 0.5) if binary else q

    # --- small shape (module-consistent): batch=8, D=128 -------------------
    batch = 8
    x = jax.random.normal(k_x, (batch, embedding_dim), jnp.float32)

    out = jax.block_until_ready(
        quantization_stage1_with_scales(x, thresholds, scales, binary=False))
    assert out.shape == (batch, embedding_dim) and out.dtype == jnp.float32
    assert jnp.allclose(out, reference(x, thresholds, scales), atol=1e-5, rtol=1e-5)

    out_bin = jax.block_until_ready(
        quantization_stage1_with_scales(x, thresholds, scales, binary=True))
    ref_bin = reference(x, thresholds, scales, binary=True).astype(jnp.float32)
    assert out_bin.dtype == jnp.float32
    assert jnp.array_equal(out_bin, ref_bin)

    out_bin_i8 = jax.block_until_ready(
        quantization_stage1_with_scales(x, thresholds, scales,
                                        binary=True, binary_out_dtype=jnp.int8))
    assert out_bin_i8.dtype == jnp.int8
    assert jnp.array_equal(out_bin_i8.astype(jnp.float32), ref_bin)

    # --- larger batch: exercises the guaranteed multi-step pipeline --------
    big = jax.random.normal(k_big, (4096, embedding_dim), jnp.float32)  # 2 MiB -> >=4 steps
    out_big = jax.block_until_ready(
        quantization_stage1_with_scales(big, thresholds, scales))
    assert jnp.allclose(out_big, reference(big, thresholds, scales), atol=1e-5, rtol=1e-5)

    # --- bf16 I/O: half the HBM traffic, f32 math in-kernel ----------------
    xb = jax.random.normal(k_bf, (2048, embedding_dim), jnp.float32).astype(jnp.bfloat16)
    out_bf = jax.block_until_ready(
        quantization_stage1_with_scales(xb, thresholds, scales))
    assert out_bf.dtype == jnp.bfloat16
    assert jnp.allclose(out_bf.astype(jnp.float32), reference(xb, thresholds, scales),
                        atol=1e-2, rtol=1e-2)

    # --- lane-fold path: D=64 (not a multiple of 128) -> folded to (B/2, 128)
    d_odd = 64
    thr_o = jax.random.normal(k_thr, (d_odd,), jnp.float32) * INIT_STD
    scl_o = 1.0 + jax.random.normal(k_scl, (d_odd,), jnp.float32) * INIT_STD
    xo = jax.random.normal(k_odd, (8, d_odd), jnp.float32)
    out_o = jax.block_until_ready(
        quantization_stage1_with_scales(xo, thr_o, scl_o))
    assert out_o.shape == (8, d_odd)
    assert jnp.allclose(out_o, reference(xo, thr_o, scl_o), atol=1e-5, rtol=1e-5)

    print("KERNEL_OK")
</pallas_src>

<mosaic_0001>
module attributes {stable_mosaic.version = 11 : i64} {
  func.func @_quant_kernel(%arg0: i32, %arg1: memref<8x128xf32, #tpu.memory_space<vmem>>, %arg2: memref<1x128xf32, #tpu.memory_space<vmem>>, %arg3: memref<1x128xf32, #tpu.memory_space<vmem>>, %arg4: memref<8x128xf32, #tpu.memory_space<vmem>>) attributes {dimension_semantics = [#tpu.dimension_semantics<parallel>], iteration_bounds = array<i64: 1>, scalar_prefetch = 0 : i64, scratch_operands = 0 : i64, tpu.core_type = #tpu.core_type<tc>, window_params = [{transform_indices = @transform_0, window_bounds = array<i64: 8, 128>}, {pipeline_mode = #tpu.pipeline_mode<synchronous>, transform_indices = @transform_1, window_bounds = array<i64: 1, 128>}, {pipeline_mode = #tpu.pipeline_mode<synchronous>, transform_indices = @transform_2, window_bounds = array<i64: 1, 128>}, {transform_indices = @transform_3, window_bounds = array<i64: 8, 128>}]} {
    %c0 = arith.constant 0 : index
    %c0_0 = arith.constant 0 : index
    %0 = vector.load %arg1[%c0, %c0_0] : memref<8x128xf32, #tpu.memory_space<vmem>>, vector<8x128xf32>
    %c0_1 = arith.constant 0 : index
    %c0_2 = arith.constant 0 : index
    %1 = vector.load %arg3[%c0_1, %c0_2] : memref<1x128xf32, #tpu.memory_space<vmem>>, vector<1x128xf32>
    %2 = vector.broadcast %1 : vector<1x128xf32> to vector<8x128xf32>
    %3 = arith.mulf %0, %2 : vector<8x128xf32>
    %c0_3 = arith.constant 0 : index
    %c0_4 = arith.constant 0 : index
    %4 = vector.load %arg2[%c0_3, %c0_4] : memref<1x128xf32, #tpu.memory_space<vmem>>, vector<1x128xf32>
    %5 = vector.broadcast %4 : vector<1x128xf32> to vector<8x128xf32>
    %6 = arith.subf %3, %5 : vector<8x128xf32>
    %7 = arith.negf %6 : vector<8x128xf32>
    %8 = math.exp %7 : vector<8x128xf32>
    %cst = arith.constant 1.000000e+00 : f32
    %9 = vector.broadcast %cst : f32 to vector<8x128xf32>
    %10 = arith.addf %9, %8 : vector<8x128xf32>
    %11 = arith.divf %9, %10 : vector<8x128xf32>
    %c0_5 = arith.constant 0 : index
    %c0_6 = arith.constant 0 : index
    %12 = vector.load %arg4[%c0_5, %c0_6] : memref<8x128xf32, #tpu.memory_space<vmem>>, vector<8x128xf32>
    tpu.vector_store %arg4[%c0_5, %c0_6], %11 {strides = array<i32>} : memref<8x128xf32, #tpu.memory_space<vmem>>, vector<8x128xf32>,
    return
  }
  func.func @transform_0(%arg0: i32) -> (i32, i32) {
    %c0_i32 = arith.constant 0 : i32
    %c0_i32_0 = arith.constant 0 : i32
    return %arg0, %c0_i32 : i32, i32
  }
  func.func @transform_1(%arg0: i32) -> (i32, i32) {
    %c0_i32 = arith.constant 0 : i32
    %c0_i32_0 = arith.constant 0 : i32
    %c0_i32_1 = arith.constant 0 : i32
    return %c0_i32, %c0_i32_0 : i32, i32
  }
  func.func @transform_2(%arg0: i32) -> (i32, i32) {
    %c0_i32 = arith.constant 0 : i32
    %c0_i32_0 = arith.constant 0 : i32
    %c0_i32_1 = arith.constant 0 : i32
    return %c0_i32, %c0_i32_0 : i32, i32
  }
  func.func @transform_3(%arg0: i32) -> (i32, i32) {
    %c0_i32 = arith.constant 0 : i32
    %c0_i32_0 = arith.constant 0 : i32
    return %arg0, %c0_i32 : i32, i32
  }
}

</mosaic_0001>

<llo_original>
// kernel: tpu_custom_call.1
$region0: #{tpu_custom_call.1}
  #allocation0 [shape = 'u32[]', space=smem, size = 0x4, offset = 0x4, fixed_abs, tag = 'smem constant byte address 0x4 - core index']
  #allocation1 [shape = 'u32[144,128]{1,0:T(1,128)}', space=vmem, size = 0x12000, scoped, tag = 'internal scratch']
  %s0 = inlined_call_operand.hbm [shape: f32[8,128], index: 0, kind: input, shape index: {}]
  %s1 = inlined_call_operand.vmem [shape: f32[1,128], index: 1, kind: input, shape index: {}]
  %s2 = inlined_call_operand.vmem [shape: f32[1,128], index: 2, kind: input, shape index: {}]
  %s3 = inlined_call_operand.hbm [shape: f32[8,128], index: 3, kind: output, shape index: {}]
  %s4 = sld [smem:[#allocation0]]
  $region26: #{tpu_custom_call.1} parent=0
    _
  %s6 = ssub.s32 1, %s4
  %s7 = scalar_select 0, %s6, %s4
  $region1: #{tpu_custom_call.1} parent=0
    #allocation2 [shape = 'u8[4096]{0}', space=vmem, size = 0x1000, scoped, tag = 'input window, operand 0, single buffered']
    #allocation3 [shape = 's32[1]{0}', space=sflag, size = 0x4, scoped, tag = 'scoped memory for tpu_custom_call.1']
    #allocation4 [shape = 's32[1]{0}', space=sflag, size = 0x4, scoped, tag = 'scoped memory for tpu_custom_call.1']
    #allocation5 [shape = 'u8[4096]{0}', space=vmem, size = 0x1000, scoped, tag = 'output window, operand 0, single buffered']
    %8 = vsyncpa [#allocation3], 0
    %9 = vsyncpa [#allocation4], 0
    // Predicated region
    $region2: #{tpu_custom_call.1} parent=1 // pred_check
      _
    $region3: #{tpu_custom_call.1} parent=1 // pred_check_branch
      %11 = sbr.rel (0) target = $region5
    $region4: #{tpu_custom_call.1} parent=1 // pred_region
      %s13 = ssub.s32 128, 128
      %14 = vsyncadd [#allocation3], %s13
      %s16 = sshll.u32 [#allocation2], 4
      %s17 = int_to_ptr.vmem [resolvable:$true] %s16
      %19 = dma.hbm_to_vmem [thread:$0]  %s0, 128, %s17, [#allocation3]
    $region5: #{tpu_custom_call.1} parent=1 // pred_fallthru
      _
    // Predicated region
    $region6: #{tpu_custom_call.1} parent=1 // pred_check
      _
    $region7: #{tpu_custom_call.1} parent=1 // pred_check_branch
      %21 = sbr.rel (0) target = $region9
    $region8: #{tpu_custom_call.1} parent=1 // pred_region
      _
    $region9: #{tpu_custom_call.1} parent=1 // pred_fallthru
      _
    // Predicated region
    $region10: #{tpu_custom_call.1} parent=1 // pred_check
      _
    $region11: #{tpu_custom_call.1} parent=1 // pred_check_branch
      %23 = sbr.rel (0) target = $region13
    $region12: #{tpu_custom_call.1} parent=1 // pred_region
      _
    $region13: #{tpu_custom_call.1} parent=1 // pred_fallthru
      _
    // Predicated region
    $region14: #{tpu_custom_call.1} parent=1 // pred_check
      _
    $region15: #{tpu_custom_call.1} parent=1 // pred_check_branch
      %25 = sbr.rel (0) target = $region17
    $region16: #{tpu_custom_call.1} parent=1 // pred_region
      %26 = dma.done [#allocation3], 128
    $region17: #{tpu_custom_call.1} parent=1 // pred_fallthru
      _
    %v27 = vld [vmem:[#allocation2] sm:$0xff]
    %v28 = vld [vmem:[%s2] sm:$0x1]
    %v30 = vlaneseq
    %v31 = vshrl.u32 %v30, 7
    %v32 = vsub.s32 0, %v31
    %v33 = vrot.slane %v28, %v32
    %v35 = vmul.f32 %v27, %v33
    %v36 = vld [vmem:[%s1] sm:$0x1]
    %v38 = vlaneseq
    %v39 = vshrl.u32 %v38, 7
    %v40 = vsub.s32 0, %v39
    %v41 = vrot.slane %v36, %v40
    %v43 = vsub.f32 %v35, %v41
    %v44 = vxor.u32 %v43, 2147483648
    %v45 = vmul.f32 %v44, 1.442695
    %v46 = vpow.pop %v45
    %v47 = vadd.f32 %v46, 1.0
    %v48 = vrcp.pop %v47
    %v49 = vmul.f32 1.0, %v48
    %50 = vst [vmem:[#allocation5] sm:$0xff] %v49
    // Predicated region
    $region18: #{tpu_custom_call.1} parent=1 // pred_check
      _
    $region19: #{tpu_custom_call.1} parent=1 // pred_check_branch
      %52 = sbr.rel (0) target = $region21
    $region20: #{tpu_custom_call.1} parent=1 // pred_region
      %s54 = ssub.s32 128, 128
      %55 = vsyncadd [#allocation4], %s54
      %s57 = sshll.u32 [#allocation5], 4
      %s58 = int_to_ptr.vmem [resolvable:$true] %s57
      %60 = dma.vmem_to_hbm [thread:$0]  %s58, 128, %s3, [#allocation4]
    $region21: #{tpu_custom_call.1} parent=1 // pred_fallthru
      _
    // Predicated region
    $region22: #{tpu_custom_call.1} parent=1 // pred_check
      _
    $region23: #{tpu_custom_call.1} parent=1 // pred_check_branch
      %62 = sbr.rel (0) target = $region25
    $region24: #{tpu_custom_call.1} parent=1 // pred_region
      %63 = dma.done [#allocation4], 128
    $region25: #{tpu_custom_call.1} parent=1 // pred_fallthru
      _
    %64 = vsyncpa [#allocation3], 1
    %65 = vsyncpa [#allocation4], 1

</llo_original>
